<compile_context>
chip_gen: v7x
topology: tpu7x:2x2x1
jax: 0.10.0
libtpu: 0.0.40
codegen_flags: <defaults>
</compile_context>

<pallas_src>
import jax
import jax.numpy as jnp
from jax.experimental import pallas as pl
from jax.experimental.pallas import tpu as pltpu


def _vmem_limit_bytes():
    """~half of physical VMEM, capped: v7x (64 MiB) -> 32 MiB, v5e/v6e (128 MiB) -> 64 MiB."""
    try:
        cap = int(pltpu.get_tpu_info().vmem_capacity_bytes)
    except Exception:
        cap = 64 * 1024 * 1024
    return int(min(max(cap // 2, 32 * 1024 * 1024), 100 * 1024 * 1024))


# ----------------------------- Pallas kernels -----------------------------

def _uav_kernel(z_ref, wz_ref, bz_ref, wo_ref, wmod_ref):
    """UAV branch, run exactly once (hoisted out of the satellite token grid).

    z_ref  : (B, Nz, P) f32 UAV patch tokens
    wz_ref : (P, C)     f32 fused UAV backbone @ (sum of selected neck levels)
    bz_ref : (1, C)     f32 fused UAV bias
    wo_ref : (Rp, C)    f32 row0 = ones (cls), rows1..2 = w_reg.T, rest zero-pad
    wmod   : (B, Rp, C) f32 per-batch modulated head weight
    """
    z_pool = jnp.mean(z_ref[...], axis=1)                                  # (B, P)
    z_vec = (jnp.dot(z_pool, wz_ref[...],
                     preferred_element_type=jnp.float32) + bz_ref[...])    # (B, C)
    wmod_ref[...] = wo_ref[...][None, :, :] * z_vec[:, None, :]            # (B, Rp, C)


def uav_branch(z_tokens, w_z, b_z, w_out):
    B, Nz, P = z_tokens.shape
    C = w_z.shape[1]
    Rp = w_out.shape[0]
    return pl.pallas_call(
        _uav_kernel,
        out_shape=jax.ShapeDtypeStruct((B, Rp, C), jnp.float32),
    )(z_tokens, w_z, b_z.reshape(1, C), w_out)


def _head_kernel(x_ref, wxT_ref, bx_ref, wmod_ref, bo_ref, out_ref):
    """Fused satellite backbone+neck projection + correlation head (tokens-on-lane).

    x_ref   : (P, tn)  bf16 satellite patch tokens (token axis on lanes)
    wxT_ref : (C, P)   bf16 fused satellite backbone@neck weight, transposed
    bx_ref  : (C, 1)   f32  fused satellite bias
    wmod_ref: (Rp, C)  f32  per-batch modulated head weight
    bo_ref  : (Rp, 1)  f32  head bias (applied exactly once)
    out_ref : (Rp, tn) f32  [cls | reg | pad] — lane-dense, already NCHW order
    """
    feat = (jnp.dot(wxT_ref[...], x_ref[...],
                    preferred_element_type=jnp.float32) + bx_ref[...])     # (C, tn)
    out_ref[...] = (jnp.dot(wmod_ref[...], feat,
                            preferred_element_type=jnp.float32) + bo_ref[...])


def corr_head(x_cols, wxT, bx, wmod, bo, tn_max=4096):
    """Head pallas_call: grid = (batch, token tiles), both 'parallel'."""
    B, P, Nx = x_cols.shape
    C = wxT.shape[0]
    Rp = wmod.shape[1]

    # Token-tile selection: whole array if small; otherwise the largest
    # 128-multiple divisor of Nx (no wrapper pad); pad only as a last resort.
    if Nx <= tn_max:
        tn, Nxp = Nx, Nx
    else:
        tn = 0
        for cand in range(tn_max - tn_max % 128, 0, -128):
            if Nx % cand == 0:
                tn = cand
                break
        if tn:
            Nxp = Nx
        else:
            tn = tn_max
            Nxp = pl.cdiv(Nx, tn) * tn
    xp = x_cols if Nxp == Nx else jnp.pad(x_cols, ((0, 0), (0, 0), (0, Nxp - Nx)))

    flops = 2 * B * Nxp * C * (P + Rp)
    bytes_accessed = (B * P * Nxp * 2 + C * P * 2 + C * 4
                      + B * Rp * C * 4 + Rp * 4 + B * Rp * Nxp * 4)

    out = pl.pallas_call(
        _head_kernel,
        out_shape=jax.ShapeDtypeStruct((B, Rp, Nxp), jnp.float32),
        grid=(B, Nxp // tn),
        in_specs=[pl.BlockSpec((None, P, tn), lambda b, i: (b, 0, i)),
                  pl.BlockSpec((C, P), lambda b, i: (0, 0)),
                  pl.BlockSpec((C, 1), lambda b, i: (0, 0)),
                  pl.BlockSpec((None, Rp, C), lambda b, i: (b, 0, 0)),
                  pl.BlockSpec((Rp, 1), lambda b, i: (0, 0))],
        out_specs=pl.BlockSpec((None, Rp, tn), lambda b, i: (b, 0, i)),
        compiler_params=pltpu.CompilerParams(
            dimension_semantics=("parallel", "parallel"),
            vmem_limit_bytes=_vmem_limit_bytes()),
        cost_estimate=pl.CostEstimate(flops=flops, transcendentals=0,
                                      bytes_accessed=bytes_accessed),
    )(xp, wxT, bx, wmod, bo)
    return out if Nxp == Nx else out[:, :, :Nx]


# ------------------------------- JAX glue ----------------------------------

def _to_patches(img_nchw, patch):
    """NCHW -> non-overlapping patch tokens (B*N, P), P ordering (ph, pw, cin)."""
    B, Cin, H, W = img_nchw.shape
    x = jnp.transpose(img_nchw, (0, 2, 3, 1))                    # NHWC
    x = x.reshape(B, H // patch, patch, W // patch, patch, Cin)
    x = jnp.transpose(x, (0, 1, 3, 2, 4, 5))
    x = x.reshape(B * (H // patch) * (W // patch), patch * patch * Cin)
    return x, (H // patch, W // patch)


def _to_patch_cols(img_nchw, patch):
    """NCHW -> (B, P, N): patch tokens with the token axis last (tokens-on-lane).
    Same P ordering (ph, pw, cin) and N ordering (hp, wp) as _to_patches."""
    B, Cin, H, W = img_nchw.shape
    hp, wp = H // patch, W // patch
    x = jnp.transpose(img_nchw, (0, 2, 3, 1))                    # NHWC
    x = x.reshape(B, hp, patch, wp, patch, Cin)
    x = jnp.transpose(x, (0, 2, 4, 5, 1, 3))                     # (B, ph, pw, Cin, hp, wp)
    x = x.reshape(B, patch * patch * Cin, hp * wp)               # (B, P, N)
    return x, (hp, wp)


class FPIPallas:
    """Synthetic FPI: backbone_uav / backbone_satellite (not shared),
    neck_uav / neck_satellite (2 levels each), correlation head.
    Backbone+neck(+level-sum) weights are fused once at init time."""

    _RP = 8  # padded head-row count (cls + 2 reg + 5 zero rows) for unmasked stores

    def __init__(self, key, cin=3, patch=4, channels=128, num_levels=2,
                 uav_output_index=(0, 1), satellite_output_index=0,
                 upsample_to_original=False):
        self.patch = patch
        self.channels = channels
        self.uav_output_index = tuple(uav_output_index)
        self.satellite_output_index = satellite_output_index
        self.upsample_to_original = upsample_to_original

        P = patch * patch * cin
        keys = jax.random.split(key, 2 + 2 * num_levels + 1)

        def init(k, shape, scale=0.05):
            return jax.random.normal(k, shape, jnp.float32) * scale

        # raw parameters (mirror FPI's backbone / neck / head structure)
        self.w_be_uav = init(keys[0], (P, channels))
        self.b_be_uav = jnp.zeros((channels,), jnp.float32)
        self.w_be_sat = init(keys[1], (P, channels))
        self.b_be_sat = jnp.zeros((channels,), jnp.float32)

        self.w_neck_uav = [init(keys[2 + l], (channels, channels))
                           for l in range(num_levels)]
        self.b_neck_uav = [jnp.zeros((channels,), jnp.float32)
                           for _ in range(num_levels)]
        self.w_neck_sat = [init(keys[2 + num_levels + l], (channels, channels))
                           for l in range(num_levels)]
        self.b_neck_sat = [jnp.zeros((channels,), jnp.float32)
                           for _ in range(num_levels)]

        self.w_reg = init(keys[-1], (channels, 2))
        self.b_reg = jnp.zeros((2,), jnp.float32)

        # ---- fused parameters (fold backbone+neck, collapse levels) ----
        # UAV branch: sum_l mean_n(neck_z_l) == mean_n(zp) @ (W_be @ sum_l W_l) + bias.
        w_neck_sum = sum(self.w_neck_uav[i] for i in self.uav_output_index)
        b_neck_sum = sum(self.b_neck_uav[i] for i in self.uav_output_index)
        self.w_z = self.w_be_uav @ w_neck_sum                       # (P, C)
        self.b_z = self.b_be_uav @ w_neck_sum + b_neck_sum          # (C,)

        # Satellite branch: single selected level, backbone+neck folded,
        # stored transposed (C, P) in bf16 for the tokens-on-lane head kernel.
        wns = self.w_neck_sat[satellite_output_index]
        w_x = self.w_be_sat @ wns                                   # (P, C)
        b_x = self.b_be_sat @ wns + self.b_neck_sat[satellite_output_index]
        self.w_x = w_x
        self.b_x = b_x
        self.wxT_bf16 = w_x.T.astype(jnp.bfloat16)                  # (C, P)
        self.bx_col = b_x.reshape(channels, 1)                      # (C, 1) f32

        # Head: [cls | reg | pad] rows; padded to 8 rows (zero weight/bias).
        Rp = self._RP
        self.w_out = jnp.concatenate(
            [jnp.ones((1, channels), jnp.float32), self.w_reg.T,
             jnp.zeros((Rp - 3, channels), jnp.float32)], axis=0)   # (8, C)
        self.b_out = jnp.concatenate(
            [jnp.zeros((1,), jnp.float32), self.b_reg,
             jnp.zeros((Rp - 3,), jnp.float32)]).reshape(Rp, 1)     # (8, 1)

    def __call__(self, z, x):
        B = z.shape[0]

        # UAV branch (levels collapsed by linearity), computed ONCE by a tiny
        # Pallas kernel; result is the per-batch modulated head weight.
        zp, (hz, wz) = _to_patches(z, self.patch)                   # (B*Nz, P)
        z_tokens = zp.reshape(B, hz * wz, -1)                       # (B, Nz, P)
        wmod = uav_branch(z_tokens, self.w_z, self.b_z, self.w_out) # (B, 8, C) f32

        # Satellite backbone+neck + correlation head fused in one kernel,
        # tokens-on-lane, bf16 input stream, f32 accumulation.
        x_cols, (hx, wx) = _to_patch_cols(x, self.patch)            # (B, P, Nx)
        out = corr_head(x_cols.astype(jnp.bfloat16),
                        self.wxT_bf16, self.bx_col,
                        wmod, self.b_out)                           # (B, 8, Nx)

        out = out.reshape(B, self._RP, hx, wx)                      # NCHW directly
        cls_out = out[:, :1]                                        # (B, 1, Hs, Ws)
        reg_out = out[:, 1:3]                                       # (B, 2, Hs, Ws)

        # TODO(synk): postprocess / upsample_to_original not implemented
        # (config-driven branch disabled in this synthetic setup).
        return cls_out, reg_out


def _reference_forward(m, z, x):
    """Pure-JAX un-fused reference (backbone -> per-level neck -> head)."""
    B = z.shape[0]
    zp, (hz, wz) = _to_patches(z, m.patch)
    xp, (hx, wx) = _to_patches(x, m.patch)
    Nz, Nx = hz * wz, hx * wx
    with jax.default_matmul_precision("highest"):
        fz = zp @ m.w_be_uav + m.b_be_uav
        fx = xp @ m.w_be_sat + m.b_be_sat
        neck_z = [(fz @ w + b).reshape(B, Nz, -1)
                  for w, b in zip(m.w_neck_uav, m.b_neck_uav)]
        neck_z = [neck_z[i] for i in m.uav_output_index]
        ws = m.w_neck_sat[m.satellite_output_index]
        bs = m.b_neck_sat[m.satellite_output_index]
        neck_x = (fx @ ws + bs).reshape(B, Nx, -1)
        cls = jnp.zeros((B, Nx), jnp.float32)
        reg = jnp.zeros((B, Nx, 2), jnp.float32)
        for zl in neck_z:
            zv = zl.mean(axis=1)
            mod = neck_x * zv[:, None, :]
            cls = cls + mod.sum(-1)
            reg = reg + mod @ m.w_reg
        reg = reg + m.b_reg                      # bias applied once
    cls_out = cls.reshape(B, 1, hx, wx)
    reg_out = jnp.transpose(reg.reshape(B, hx, wx, 2), (0, 3, 1, 2))
    return cls_out, reg_out


if __name__ == "__main__":
    key = jax.random.PRNGKey(0)
    kz, kx, kp = jax.random.split(key, 3)

    B = 2
    z = jax.random.normal(kz, (B, 3, 8, 8), jnp.float32)     # UAV patch  (NCHW)
    x = jax.random.normal(kx, (B, 3, 16, 16), jnp.float32)   # satellite  (NCHW)

    model = FPIPallas(kp)
    cls_out, reg_out = model(z, x)
    jax.block_until_ready((cls_out, reg_out))

    assert cls_out.shape == (B, 1, 4, 4), cls_out.shape
    assert reg_out.shape == (B, 2, 4, 4), reg_out.shape
    assert jnp.all(jnp.isfinite(cls_out)) and jnp.all(jnp.isfinite(reg_out))

    cls_ref, reg_ref = _reference_forward(model, z, x)
    # bf16 operand cast on the satellite stream -> slightly looser tolerance.
    assert jnp.allclose(cls_out, cls_ref, rtol=2e-2, atol=2e-2), "cls mismatch"
    assert jnp.allclose(reg_out, reg_ref, rtol=2e-2, atol=2e-2), "reg mismatch"

    print("KERNEL_OK")
</pallas_src>

<mosaic_0001>
module attributes {stable_mosaic.version = 11 : i64} {
  func.func @_uav_kernel(%arg0: memref<2x4x48xf32, #tpu.memory_space<vmem>>, %arg1: memref<48x128xf32, #tpu.memory_space<vmem>>, %arg2: memref<1x128xf32, #tpu.memory_space<vmem>>, %arg3: memref<8x128xf32, #tpu.memory_space<vmem>>, %arg4: memref<2x8x128xf32, #tpu.memory_space<vmem>>) attributes {dimension_semantics = [], scalar_prefetch = 0 : i64, scratch_operands = 0 : i64, tpu.core_type = #tpu.core_type<tc>} {
    %c0 = arith.constant 0 : index
    %c0_0 = arith.constant 0 : index
    %c0_1 = arith.constant 0 : index
    %0 = vector.load %arg0[%c0, %c0_0, %c0_1] : memref<2x4x48xf32, #tpu.memory_space<vmem>>, vector<2x4x48xf32>
    %cst = arith.constant dense<0.000000e+00> : vector<2x48xf32>
    %1 = vector.multi_reduction <add>, %0, %cst [1] : vector<2x4x48xf32> to vector<2x48xf32>
    %cst_2 = arith.constant 4.000000e+00 : f32
    %2 = vector.broadcast %cst_2 : f32 to vector<2x48xf32>
    %3 = arith.divf %1, %2 : vector<2x48xf32>
    %c0_3 = arith.constant 0 : index
    %c0_4 = arith.constant 0 : index
    %4 = vector.load %arg1[%c0_3, %c0_4] : memref<48x128xf32, #tpu.memory_space<vmem>>, vector<48x128xf32>
    %cst_5 = arith.constant dense<0.000000e+00> : vector<2x128xf32>
    %5 = tpu.matmul %3, %4, %cst_5 {dimension_numbers = #tpu.dot_dimension_numbers<[1], [0], [0], [1], [0, 0, 1, 1], [], []>} : vector<2x48xf32>, vector<48x128xf32>, vector<2x128xf32> -> vector<2x128xf32>
    %c0_6 = arith.constant 0 : index
    %c0_7 = arith.constant 0 : index
    %6 = vector.load %arg2[%c0_6, %c0_7] : memref<1x128xf32, #tpu.memory_space<vmem>>, vector<1x128xf32>
    %7 = vector.broadcast %6 : vector<1x128xf32> to vector<2x128xf32>
    %8 = arith.addf %5, %7 : vector<2x128xf32>
    %c0_8 = arith.constant 0 : index
    %c0_9 = arith.constant 0 : index
    %9 = vector.load %arg3[%c0_8, %c0_9] : memref<8x128xf32, #tpu.memory_space<vmem>>, vector<8x128xf32>
    %10 = vector.shape_cast %9 : vector<8x128xf32> to vector<1x8x128xf32>
    %11 = vector.shape_cast %8 : vector<2x128xf32> to vector<2x1x128xf32>
    %12 = vector.broadcast %10 : vector<1x8x128xf32> to vector<2x8x128xf32>
    %13 = vector.broadcast %11 : vector<2x1x128xf32> to vector<2x8x128xf32>
    %14 = arith.mulf %12, %13 : vector<2x8x128xf32>
    %c0_10 = arith.constant 0 : index
    %c0_11 = arith.constant 0 : index
    %c0_12 = arith.constant 0 : index
    %15 = vector.load %arg4[%c0_10, %c0_11, %c0_12] : memref<2x8x128xf32, #tpu.memory_space<vmem>>, vector<2x8x128xf32>
    tpu.vector_store %arg4[%c0_10, %c0_11, %c0_12], %14 {strides = array<i32>} : memref<2x8x128xf32, #tpu.memory_space<vmem>>, vector<2x8x128xf32>,
    return
  }
}

</mosaic_0001>

<llo_original>
// kernel: tpu_custom_call.1
$region0: #{tpu_custom_call.1}
  #allocation0 [shape = 'u32[]', space=smem, size = 0x4, offset = 0x4, fixed_abs, tag = 'smem constant byte address 0x4 - core index']
  #allocation1 [shape = 'u32[144,128]{1,0:T(1,128)}', space=vmem, size = 0x12000, scoped, tag = 'internal scratch']
  %s0 = inlined_call_operand.hbm [shape: f32[2,4,48], index: 0, kind: input, shape index: {}]
  %s1 = inlined_call_operand.hbm [shape: f32[48,128], index: 1, kind: input, shape index: {}]
  %s2 = inlined_call_operand.vmem [shape: f32[1,128], index: 2, kind: input, shape index: {}]
  %s3 = inlined_call_operand.vmem [shape: f32[8,128], index: 3, kind: input, shape index: {}]
  %s4 = inlined_call_operand.hbm [shape: f32[2,8,128], index: 4, kind: output, shape index: {}]
  %s5 = sld [smem:[#allocation0]]
  $region34: #{tpu_custom_call.1} parent=0
    _
  %s7 = ssub.s32 1, %s5
  %s8 = scalar_select 0, %s7, %s5
  $region1: #{tpu_custom_call.1} parent=0
    #allocation2 [shape = 'u8[4096]{0}', space=vmem, size = 0x1000, scoped, tag = 'input window, operand 0, single buffered']
    #allocation3 [shape = 's32[1]{0}', space=sflag, size = 0x4, scoped, tag = 'scoped memory for tpu_custom_call.1']
    #allocation4 [shape = 's32[1]{0}', space=sflag, size = 0x4, scoped, tag = 'scoped memory for tpu_custom_call.1']
    #allocation5 [shape = 'u8[24576]{0}', space=vmem, size = 0x6000, scoped, tag = 'input window, operand 1, single buffered']
    #allocation6 [shape = 's32[1]{0}', space=sflag, size = 0x4, scoped, tag = 'scoped memory for tpu_custom_call.1']
    #allocation7 [shape = 'u8[8192]{0}', space=vmem, size = 0x2000, scoped, tag = 'output window, operand 0, single buffered']
    %9 = vsyncpa [#allocation3], 0
    %10 = vsyncpa [#allocation6], 0
    %11 = vsyncpa [#allocation4], 0
    // Predicated region
    $region2: #{tpu_custom_call.1} parent=1 // pred_check
      _
    $region3: #{tpu_custom_call.1} parent=1 // pred_check_branch
      %13 = sbr.rel (0) target = $region5
    $region4: #{tpu_custom_call.1} parent=1 // pred_region
      %s15 = ssub.s32 128, 128
      %16 = vsyncadd [#allocation3], %s15
      %s17 = sshll.u32 [#allocation2], 4
      %s18 = int_to_ptr.vmem [resolvable:$true] %s17
      %23 = dma.hbm_to_vmem [thread:$0]  %s0, 128, %s18, [#allocation3], 64, 64, 4
    $region5: #{tpu_custom_call.1} parent=1 // pred_fallthru
      _
    // Predicated region
    $region6: #{tpu_custom_call.1} parent=1 // pred_check
      _
    $region7: #{tpu_custom_call.1} parent=1 // pred_check_branch
      %25 = sbr.rel (0) target = $region9
    $region8: #{tpu_custom_call.1} parent=1 // pred_region
      %s27 = ssub.s32 768, 768
      %28 = vsyncadd [#allocation6], %s27
      %s29 = sshll.u32 [#allocation5], 4
      %s30 = int_to_ptr.vmem [resolvable:$true] %s29
      %35 = dma.hbm_to_vmem [thread:$0]  %s1, 768, %s30, [#allocation6], 128, 128, 8
    $region9: #{tpu_custom_call.1} parent=1 // pred_fallthru
      _
    // Predicated region
    $region10: #{tpu_custom_call.1} parent=1 // pred_check
      _
    $region11: #{tpu_custom_call.1} parent=1 // pred_check_branch
      %37 = sbr.rel (0) target = $region13
    $region12: #{tpu_custom_call.1} parent=1 // pred_region
      _
    $region13: #{tpu_custom_call.1} parent=1 // pred_fallthru
      _
    // Predicated region
    $region14: #{tpu_custom_call.1} parent=1 // pred_check
      _
    $region15: #{tpu_custom_call.1} parent=1 // pred_check_branch
      %39 = sbr.rel (0) target = $region17
    $region16: #{tpu_custom_call.1} parent=1 // pred_region
      _
    $region17: #{tpu_custom_call.1} parent=1 // pred_fallthru
      _
    // Predicated region
    $region18: #{tpu_custom_call.1} parent=1 // pred_check
      _
    $region19: #{tpu_custom_call.1} parent=1 // pred_check_branch
      %41 = sbr.rel (0) target = $region21
    $region20: #{tpu_custom_call.1} parent=1 // pred_region
      %42 = dma.done [#allocation3], 128
    $region21: #{tpu_custom_call.1} parent=1 // pred_fallthru
      _
    // Predicated region
    $region22: #{tpu_custom_call.1} parent=1 // pred_check
      _
    $region23: #{tpu_custom_call.1} parent=1 // pred_check_branch
      %44 = sbr.rel (0) target = $region25
    $region24: #{tpu_custom_call.1} parent=1 // pred_region
      %45 = dma.done [#allocation6], 768
    $region25: #{tpu_custom_call.1} parent=1 // pred_fallthru
      _
    %v46 = vld [vmem:[#allocation2] sm:$0xf]
    %v47 = vld [vmem:[#allocation2 + $0x4] sm:$0xf]
    %vm48 = vcmask 388096
    %v49 = vsel %vm48, %v46, 0.0
    %v50 = vrot.slane %v49, 4
    %v51 = vadd.f32 %v49, %v50
    %v52 = vrot.slane %v51, 2
    %v53 = vadd.f32 %v51, %v52
    %v54 = vrot.slane %v53, 1
    %v55 = vadd.f32 %v53, %v54
    %v56 = vsel %vm48, %v47, 0.0
    %v57 = vrot.slane %v56, 4
    %v58 = vadd.f32 %v56, %v57
    %v59 = vrot.slane %v58, 2
    %v60 = vadd.f32 %v58, %v59
    %v61 = vrot.slane %v60, 1
    %v62 = vadd.f32 %v60, %v61
    %v63 = vrcp.pop 4.0
    %v64 = vmul.f32 %v55, %v63
    %v65 = vmul.f32 %v62, %v63
    %v66 = vld [vmem:[#allocation5] sm:$0xff]
    %v67 = vld [vmem:[#allocation5 + $0x8] sm:$0xff]
    %v68 = vld [vmem:[#allocation5 + $0x10] sm:$0xff]
    %v69 = vld [vmem:[#allocation5 + $0x18] sm:$0xff]
    %v70 = vld [vmem:[#allocation5 + $0x20] sm:$0xff]
    %v71 = vld [vmem:[#allocation5 + $0x28] sm:$0xff]
    %v72 = vld [vmem:[%s2] sm:$0x1]
    %v74 = vlaneseq
    %v75 = vshrl.u32 %v74, 7
    %v76 = vsub.s32 0, %v75
    %v77 = vrot.slane %v72, %v76
    %vm81 = vcmask 1041409
    %v82 = vsel %vm81, %v65, %v64
    %vm83 = vcmask 392192
    %v84 = vsel %vm83, %v82, 0
    %86 = vmatprep.subr.mxu0 0.0
    %87 = vmatpush1.msra.mxu0 %v66
    %88 = vmatprep.subr.mxu0 0.0
    %89 = vmatpush1.msra.mxu0 %v67
    %90 = vmatprep.subr.mxu0 0.0
    %91 = vmatpush1.msra.mxu0 %v68
    %92 = vmatprep.subr.mxu0 0.0
    %93 = vmatpush1.msra.mxu0 %v69
    %94 = vmatprep.subr.mxu0 0.0
    %95 = vmatpush1.msra.mxu0 %v70
    %96 = vmatprep.subr.mxu0 0.0
    %97 = vmatpush1.msra.mxu0 %v71
    %98 = vmatprep.subr.mxu0 0.0
    %99 = vmatpush1.msra.mxu0 0.0
    %100 = vmatprep.subr.mxu0 0.0
    %101 = vmatpush1.msra.mxu0 0.0
    %102 = vmatprep.subr.mxu0 0.0
    %103 = vmatpush1.msra.mxu0 0.0
    %104 = vmatprep.subr.mxu0 0.0
    %105 = vmatpush1.msra.mxu0 0.0
    %106 = vmatprep.subr.mxu0 0.0
    %107 = vmatpush1.msra.mxu0 0.0
    %108 = vmatprep.subr.mxu0 0.0
    %109 = vmatpush1.msra.mxu0 0.0
    %110 = vmatprep.subr.mxu0 0.0
    %111 = vmatpush1.msra.mxu0 0.0
    %112 = vmatprep.subr.mxu0 0.0
    %113 = vmatpush1.msra.mxu0 0.0
    %114 = vmatprep.subr.mxu0 0.0
    %115 = vmatpush1.msra.mxu0 0.0
    %116 = vmatprep.subr.mxu0 0.0
    %117 = vmatpush1.msra.mxu0 0.0
    %118 = vmatprep.subr.mxu0 0.0
    %119 = vmatpush1.msra.mxu0 0.0
    %120 = vmatprep.subr.mxu0 0.0
    %121 = vmatpush1.msra.mxu0 0.0
    %122 = vmatprep.subr.mxu0 0.0
    %123 = vmatpush1.msra.mxu0 0.0
    %124 = vmatprep.subr.mxu0 0.0
    %125 = vmatpush1.msra.mxu0 0.0
    %126 = vmatprep.subr.mxu0 0.0
    %127 = vmatpush1.msra.mxu0 0.0
    %128 = vmatprep.subr.mxu0 0.0
    %129 = vmatpush1.msra.mxu0 0.0
    %130 = vmatprep.subr.mxu0 0.0
    %131 = vmatpush1.msra.mxu0 0.0
    %132 = vmatprep.subr.mxu0 0.0
    %133 = vmatpush1.msra.mxu0 0.0
    %134 = vmatprep.subr.mxu0 0.0
    %135 = vmatpush1.msra.mxu0 0.0
    %136 = vmatprep.subr.mxu0 0.0
    %137 = vmatpush1.msra.mxu0 0.0
    %138 = vmatprep.subr.mxu0 0.0
    %139 = vmatpush1.msra.mxu0 0.0
    %140 = vmatprep.subr.mxu0 0.0
    %141 = vmatpush1.msra.mxu0 0.0
    %142 = vmatprep.subr.mxu0 0.0
    %143 = vmatpush1.msra.mxu0 0.0
    %144 = vmatprep.subr.mxu0 0.0
    %145 = vmatpush1.msra.mxu0 0.0
    %146 = vmatprep.subr.mxu0 0.0
    %147 = vmatpush1.msra.mxu0 0.0
    %148 = vmatprep.subr.mxu0 0.0
    %149 = vmatpush1.msra.mxu0 0.0
    %150 = vmatprep.mubr.f32.mxu0 0.0
    %151 = vmatmul.mubr.f32.gmra.mrb[0].mxu0 %v84
    %v152 = vpop.f32.mrb[0].mxu0
    %v153 = vadd.f32 %v77, %v152
    %v154 = vpop.f32.mrb[0].mxu0
    %155 = vdwg.mxu0
    %v156 = vld [vmem:[%s3] sm:$0xff]
    %v159 = vunpack.c.l.s4 1966171168
    %v160 = vunpack.c.0.s8 %v159
    %v161 = vlaneseq
    %v162 = vshrl.u32 %v161, 7
    %v163 = vsub.s32 %v160, %v162
    %v164 = vrot.slane %v153, %v163
    %v165 = vcombine.high %v164, %v164
    %v167 = vunpack.c.l.s4 1966171168
    %v168 = vunpack.c.0.s8 %v167
    %v169 = vlaneseq
    %v170 = vshrl.u32 %v169, 7
    %v171 = vsub.s32 %v168, %v170
    %v172 = vrot.slane %v164, %v171
    %v174 = vunpack.c.l.s4 1966171168
    %v175 = vunpack.c.0.s8 %v174
    %v176 = vlaneseq
    %v177 = vshrl.u32 %v176, 7
    %v178 = vsub.s32 %v175, %v177
    %v179 = vrot.slane %v165, %v178
    %v180 = vlaneseq
    %v181 = vshrl.u32 %v180, 7
    %v182 = vsub.s32 0, %v181
    %v183 = vrot.slane %v172, %v182
    %v184 = vlaneseq
    %v185 = vshrl.u32 %v184, 7
    %v186 = vsub.s32 0, %v185
    %v187 = vrot.slane %v179, %v186
    %v190 = vmul.f32 %v156, %v183
    %v191 = vmul.f32 %v156, %v187
    %192 = vst [vmem:[#allocation7] sm:$0xff] %v190
    %193 = vst [vmem:[#allocation7 + $0x8] sm:$0xff] %v191
    // Predicated region
    $region26: #{tpu_custom_call.1} parent=1 // pred_check
      _
    $region27: #{tpu_custom_call.1} parent=1 // pred_check_branch
      %195 = sbr.rel (0) target = $region29
    $region28: #{tpu_custom_call.1} parent=1 // pred_region
      %s197 = ssub.s32 256, 256
      %198 = vsyncadd [#allocation4], %s197
      %s199 = sshll.u32 [#allocation7], 4
      %s200 = int_to_ptr.vmem [resolvable:$true] %s199
      %205 = dma.vmem_to_hbm [thread:$0]  %s200, 256, %s4, [#allocation4], 128, 128, 8
    $region29: #{tpu_custom_call.1} parent=1 // pred_fallthru
      _
    // Predicated region
    $region30: #{tpu_custom_call.1} parent=1 // pred_check
      _
    $region31: #{tpu_custom_call.1} parent=1 // pred_check_branch
      %207 = sbr.rel (0) target = $region33
    $region32: #{tpu_custom_call.1} parent=1 // pred_region
      %208 = dma.done [#allocation4], 256
    $region33: #{tpu_custom_call.1} parent=1 // pred_fallthru
      _
    %209 = vsyncpa [#allocation3], 1
    %210 = vsyncpa [#allocation6], 1
    %211 = vsyncpa [#allocation4], 1

</llo_original>
